<compile_context>
chip_gen: v7x
topology: tpu7x:2x2x1
jax: 0.10.0
libtpu: 0.0.40
codegen_flags: <defaults>
</compile_context>

<pallas_src>
import numpy as np
import jax
import jax.numpy as jnp
from jax.experimental import pallas as pl
from jax.experimental.pallas import tpu as pltpu

KERNEL_SIZE = 5
PADDING = 4
STRIDE = 1
OUT_GROW = 2 * PADDING - KERNEL_SIZE + 1        # = 4 extra rows/cols in the output


def _gaussian_taps_1d(kernel_size=KERNEL_SIZE):
    # Deterministic parameters mirroring the module's __init__.  The module's
    # 2D kernel is exactly outer(taps, taps) (separable Gaussian).
    mean = (kernel_size - 1) / 2.0
    variance = (kernel_size / 6.0) ** 2.0
    x = np.arange(kernel_size, dtype=np.float64)
    g = np.exp(-((x - mean) ** 2) / (2.0 * variance))
    return (g / g.sum()).astype(np.float32)


_G1 = _gaussian_taps_1d()                        # (5,) separable taps
_GK = np.outer(_G1, _G1).astype(np.float32)      # (5,5) == module's 2D kernel


def _round_up(v, m):
    return -(-v // m) * m


def _vmem_capacity_bytes():
    try:
        info = pltpu.get_tpu_info()
        cap = int(getattr(info, "vmem_capacity_bytes", 0) or 0)
        if cap > 0:
            return cap
    except Exception:
        pass
    return 64 * 1024 * 1024                      # conservative fallback (v7x per-core)


def _vmem_estimate(g, H, W, in_bytes, out_bytes):
    """Working-set estimate using hardware-padded (8-sublane, 128-lane) sizes."""
    Hp, Wp = H + 2 * PADDING, W + 2 * PADDING
    Ho, Wo = H + OUT_GROW, W + OUT_GROW
    in_blk = 2 * g * _round_up(H, 8) * _round_up(W, 128) * in_bytes          # dbl-buffered in
    out_blk = 2 * g * _round_up(Ho, 8) * _round_up(Wo, 128) * out_bytes      # dbl-buffered out
    slab = g * _round_up(Hp, 8) * _round_up(Wp, 128) * 4                     # padded scratch
    live = g * (_round_up(Hp, 8) + _round_up(Ho, 8)) * _round_up(Wo, 128) * 4  # h + acc spill
    return in_blk + out_blk + slab + live


def _choose_planes_per_chunk(planes, H, W, in_bytes, out_bytes, budget):
    """Pick G = planes per grid step.  Preference order: fits the VMEM budget,
    >= 2 chunks (pipelining / megacore), even chunk count (v7x's 2 TCs), then
    the largest G (fewest grid steps).  G = 1 is the always-valid fallback."""
    best_g, best_key = 1, None
    for g in range(1, planes + 1):
        if planes % g:
            continue
        chunks = planes // g
        fits = _vmem_estimate(g, H, W, in_bytes, out_bytes) <= budget
        if not fits and g > 1:
            continue
        key = (1 if fits else 0,
               1 if (chunks >= 2 or planes == 1) else 0,
               1 if chunks % 2 == 0 else 0,
               g)
        if best_key is None or key > best_key:
            best_key, best_g = key, g
    return best_g


def _make_kernel(G, H, W):
    Hp, Wp = H + 2 * PADDING, W + 2 * PADDING
    Ho, Wo = H + OUT_GROW, W + OUT_GROW
    taps = [float(t) for t in _G1]               # baked-in deterministic weights

    def kernel(x_ref, o_ref, xp_ref):
        # x_ref : (G, H, W)    input planes of this chunk (auto-pipelined VMEM block)
        # o_ref : (G, Ho, Wo)  output planes, written directly in the final layout
        # xp_ref: (G, Hp, Wp)  zero-padded f32 copy of the input (VMEM scratch)

        zrow = jnp.zeros((G, PADDING, Wp), jnp.float32)
        zcol = jnp.zeros((G, H, PADDING), jnp.float32)
        # Halo-only zero fill; disjoint from the interior write below, so no
        # ordering hazard.  Re-done every step for multi-TensorCore safety.
        xp_ref[:, :PADDING, :] = zrow                             # top 4 rows
        xp_ref[:, PADDING + H:, :] = zrow                         # bottom 4 rows
        xp_ref[:, PADDING:PADDING + H, :PADDING] = zcol           # left 4 cols
        xp_ref[:, PADDING:PADDING + H, PADDING + W:] = zcol       # right 4 cols
        # Interior: the unpadded data.
        xp_ref[:, PADDING:PADDING + H, PADDING:PADDING + W] = (
            x_ref[...].astype(jnp.float32))

        # Horizontal 5-tap pass: output column j needs padded columns [j, j+5).
        h = taps[0] * xp_ref[:, :, 0:Wo]
        for b in range(1, KERNEL_SIZE):
            h = h + taps[b] * xp_ref[:, :, b:b + Wo]

        # Vertical 5-tap pass on the in-register h (cheap sublane shifts).
        acc = taps[0] * h[:, 0:Ho, :]
        for a in range(1, KERNEL_SIZE):
            acc = acc + taps[a] * h[:, a:a + Ho, :]

        o_ref[...] = acc.astype(o_ref.dtype)

    return kernel, Hp, Wp, Ho, Wo


def gaussian_filter(x):
    """Depthwise 5x5 Gaussian blur, stride=1, padding=4 (PyTorch Conv2d semantics).

    x: (N, C, H, W).  Returns (N, C, H+4, W+4) in x.dtype.
    """
    N, C, H, W = x.shape
    planes = N * C

    itemsize = jnp.dtype(x.dtype).itemsize
    capacity = _vmem_capacity_bytes()
    budget = capacity // 3                                  # headroom for compiler temps
    vmem_limit = int(max(32 * 1024 * 1024,
                         min((capacity * 3) // 4, 100 * 1024 * 1024)))

    G = _choose_planes_per_chunk(planes, H, W, itemsize, itemsize, budget)
    chunks = planes // G
    kernel, Hp, Wp, Ho, Wo = _make_kernel(G, H, W)

    x3 = x.reshape(planes, H, W)                            # metadata-only reshape
    out = pl.pallas_call(
        kernel,
        out_shape=jax.ShapeDtypeStruct((planes, Ho, Wo), x.dtype),
        grid=(chunks,),
        in_specs=[pl.BlockSpec((G, H, W), lambda i: (i, 0, 0))],
        out_specs=pl.BlockSpec((G, Ho, Wo), lambda i: (i, 0, 0)),
        scratch_shapes=[pltpu.VMEM((G, Hp, Wp), jnp.float32)],
        compiler_params=pltpu.CompilerParams(
            dimension_semantics=("parallel",),
            vmem_limit_bytes=vmem_limit),
    )(x3)

    return out.reshape(N, C, Ho, Wo)                        # metadata-only reshape


def _reference(x):
    # Depthwise conv reference via lax (PyTorch conv == cross-correlation).
    C = x.shape[1]
    w = jnp.asarray(_GK)[None, None, :, :]                  # (1,1,5,5)
    w = jnp.tile(w, (C, 1, 1, 1))                           # (C,1,5,5) OIHW, groups=C
    return jax.lax.conv_general_dilated(
        x, w, window_strides=(STRIDE, STRIDE),
        padding=[(PADDING, PADDING), (PADDING, PADDING)],
        dimension_numbers=("NCHW", "OIHW", "NCHW"),
        feature_group_count=C)


if __name__ == "__main__":
    k0, k1 = jax.random.split(jax.random.PRNGKey(0))

    # Shape implied by the module: 3 channels (Conv2d(3, 3, ..., groups=3)).
    x = jax.random.normal(k0, (2, 3, 16, 16), dtype=jnp.float32)
    out = jax.block_until_ready(gaussian_filter(x))
    assert out.shape == (2, 3, 20, 20), out.shape
    ref = jax.block_until_ready(_reference(x))
    np.testing.assert_allclose(np.asarray(out), np.asarray(ref),
                               rtol=1e-4, atol=1e-5)

    # Second, wider check: Wo = 128 exercises the lane-dense (unmasked) output
    # store path emphasized by the perf review.
    x2 = jax.random.normal(k1, (2, 3, 40, 124), dtype=jnp.float32)
    out2 = jax.block_until_ready(gaussian_filter(x2))
    assert out2.shape == (2, 3, 44, 128), out2.shape
    ref2 = jax.block_until_ready(_reference(x2))
    np.testing.assert_allclose(np.asarray(out2), np.asarray(ref2),
                               rtol=1e-4, atol=1e-5)

    print("KERNEL_OK")
</pallas_src>

<mosaic_0001>
module attributes {stable_mosaic.version = 11 : i64} {
  func.func @kernel(%arg0: i32, %arg1: memref<3x16x16xf32, #tpu.memory_space<vmem>>, %arg2: memref<3x20x20xf32, #tpu.memory_space<vmem>>, %arg3: memref<3x24x24xf32, #tpu.memory_space<vmem>>) attributes {dimension_semantics = [#tpu.dimension_semantics<parallel>], iteration_bounds = array<i64: 2>, scalar_prefetch = 0 : i64, scratch_operands = 1 : i64, tpu.core_type = #tpu.core_type<tc>, window_params = [{transform_indices = @transform_0, window_bounds = array<i64: 3, 16, 16>}, {transform_indices = @transform_1, window_bounds = array<i64: 3, 20, 20>}]} {
    %cst = arith.constant 0.000000e+00 : f32
    %0 = vector.broadcast %cst : f32 to vector<3x4x24xf32>
    %cst_0 = arith.constant 0.000000e+00 : f32
    %1 = vector.broadcast %cst_0 : f32 to vector<3x16x4xf32>
    %c0 = arith.constant 0 : index
    %c0_1 = arith.constant 0 : index
    %c0_2 = arith.constant 0 : index
    %2 = vector.load %arg3[%c0, %c0_1, %c0_2] : memref<3x24x24xf32, #tpu.memory_space<vmem>>, vector<3x4x24xf32>
    tpu.vector_store %arg3[%c0, %c0_1, %c0_2], %0 {strides = array<i32>} : memref<3x24x24xf32, #tpu.memory_space<vmem>>, vector<3x4x24xf32>,
    %c0_3 = arith.constant 0 : index
    %c20 = arith.constant 20 : index
    %c0_4 = arith.constant 0 : index
    %3 = vector.load %arg3[%c0_3, %c20, %c0_4] : memref<3x24x24xf32, #tpu.memory_space<vmem>>, vector<3x4x24xf32>
    tpu.vector_store %arg3[%c0_3, %c20, %c0_4], %0 {strides = array<i32>} : memref<3x24x24xf32, #tpu.memory_space<vmem>>, vector<3x4x24xf32>,
    %c0_5 = arith.constant 0 : index
    %c4 = arith.constant 4 : index
    %c0_6 = arith.constant 0 : index
    %4 = vector.load %arg3[%c0_5, %c4, %c0_6] : memref<3x24x24xf32, #tpu.memory_space<vmem>>, vector<3x16x4xf32>
    tpu.vector_store %arg3[%c0_5, %c4, %c0_6], %1 {strides = array<i32>} : memref<3x24x24xf32, #tpu.memory_space<vmem>>, vector<3x16x4xf32>,
    %c0_7 = arith.constant 0 : index
    %c4_8 = arith.constant 4 : index
    %c20_9 = arith.constant 20 : index
    %5 = vector.load %arg3[%c0_7, %c4_8, %c20_9] : memref<3x24x24xf32, #tpu.memory_space<vmem>>, vector<3x16x4xf32>
    tpu.vector_store %arg3[%c0_7, %c4_8, %c20_9], %1 {strides = array<i32>} : memref<3x24x24xf32, #tpu.memory_space<vmem>>, vector<3x16x4xf32>,
    %c0_10 = arith.constant 0 : index
    %c0_11 = arith.constant 0 : index
    %c0_12 = arith.constant 0 : index
    %6 = vector.load %arg1[%c0_10, %c0_11, %c0_12] : memref<3x16x16xf32, #tpu.memory_space<vmem>>, vector<3x16x16xf32>
    %c0_13 = arith.constant 0 : index
    %c4_14 = arith.constant 4 : index
    %c4_15 = arith.constant 4 : index
    %7 = vector.load %arg3[%c0_13, %c4_14, %c4_15] : memref<3x24x24xf32, #tpu.memory_space<vmem>>, vector<3x16x16xf32>
    tpu.vector_store %arg3[%c0_13, %c4_14, %c4_15], %6 {strides = array<i32>} : memref<3x24x24xf32, #tpu.memory_space<vmem>>, vector<3x16x16xf32>,
    %c0_16 = arith.constant 0 : index
    %c0_17 = arith.constant 0 : index
    %c0_18 = arith.constant 0 : index
    %8 = vector.load %arg3[%c0_16, %c0_17, %c0_18] : memref<3x24x24xf32, #tpu.memory_space<vmem>>, vector<3x24x20xf32>
    %cst_19 = arith.constant 0.0269131567 : f32
    %9 = vector.broadcast %cst_19 : f32 to vector<3x24x20xf32>
    %10 = arith.mulf %9, %8 : vector<3x24x20xf32>
    %c0_20 = arith.constant 0 : index
    %c0_21 = arith.constant 0 : index
    %c1 = arith.constant 1 : index
    %11 = vector.load %arg3[%c0_20, %c0_21, %c1] : memref<3x24x24xf32, #tpu.memory_space<vmem>>, vector<3x24x20xf32>
    %cst_22 = arith.constant 0.233367682 : f32
    %12 = vector.broadcast %cst_22 : f32 to vector<3x24x20xf32>
    %13 = arith.mulf %12, %11 : vector<3x24x20xf32>
    %14 = arith.addf %10, %13 : vector<3x24x20xf32>
    %c0_23 = arith.constant 0 : index
    %c0_24 = arith.constant 0 : index
    %c2 = arith.constant 2 : index
    %15 = vector.load %arg3[%c0_23, %c0_24, %c2] : memref<3x24x24xf32, #tpu.memory_space<vmem>>, vector<3x24x20xf32>
    %cst_25 = arith.constant 0.479438305 : f32
    %16 = vector.broadcast %cst_25 : f32 to vector<3x24x20xf32>
    %17 = arith.mulf %16, %15 : vector<3x24x20xf32>
    %18 = arith.addf %14, %17 : vector<3x24x20xf32>
    %c0_26 = arith.constant 0 : index
    %c0_27 = arith.constant 0 : index
    %c3 = arith.constant 3 : index
    %19 = vector.load %arg3[%c0_26, %c0_27, %c3] : memref<3x24x24xf32, #tpu.memory_space<vmem>>, vector<3x24x20xf32>
    %cst_28 = arith.constant 0.233367682 : f32
    %20 = vector.broadcast %cst_28 : f32 to vector<3x24x20xf32>
    %21 = arith.mulf %20, %19 : vector<3x24x20xf32>
    %22 = arith.addf %18, %21 : vector<3x24x20xf32>
    %c0_29 = arith.constant 0 : index
    %c0_30 = arith.constant 0 : index
    %c4_31 = arith.constant 4 : index
    %23 = vector.load %arg3[%c0_29, %c0_30, %c4_31] : memref<3x24x24xf32, #tpu.memory_space<vmem>>, vector<3x24x20xf32>
    %cst_32 = arith.constant 0.0269131567 : f32
    %24 = vector.broadcast %cst_32 : f32 to vector<3x24x20xf32>
    %25 = arith.mulf %24, %23 : vector<3x24x20xf32>
    %26 = arith.addf %22, %25 : vector<3x24x20xf32>
    %27 = vector.extract_strided_slice %26 {offsets = [0, 0, 0], sizes = [3, 20, 20], strides = [1, 1, 1]} : vector<3x24x20xf32> to vector<3x20x20xf32>
    %cst_33 = arith.constant 0.0269131567 : f32
    %28 = vector.broadcast %cst_33 : f32 to vector<3x20x20xf32>
    %29 = arith.mulf %28, %27 : vector<3x20x20xf32>
    %30 = vector.extract_strided_slice %26 {offsets = [0, 1, 0], sizes = [3, 20, 20], strides = [1, 1, 1]} : vector<3x24x20xf32> to vector<3x20x20xf32>
    %cst_34 = arith.constant 0.233367682 : f32
    %31 = vector.broadcast %cst_34 : f32 to vector<3x20x20xf32>
    %32 = arith.mulf %31, %30 : vector<3x20x20xf32>
    %33 = arith.addf %29, %32 : vector<3x20x20xf32>
    %34 = vector.extract_strided_slice %26 {offsets = [0, 2, 0], sizes = [3, 20, 20], strides = [1, 1, 1]} : vector<3x24x20xf32> to vector<3x20x20xf32>
    %cst_35 = arith.constant 0.479438305 : f32
    %35 = vector.broadcast %cst_35 : f32 to vector<3x20x20xf32>
    %36 = arith.mulf %35, %34 : vector<3x20x20xf32>
    %37 = arith.addf %33, %36 : vector<3x20x20xf32>
    %38 = vector.extract_strided_slice %26 {offsets = [0, 3, 0], sizes = [3, 20, 20], strides = [1, 1, 1]} : vector<3x24x20xf32> to vector<3x20x20xf32>
    %cst_36 = arith.constant 0.233367682 : f32
    %39 = vector.broadcast %cst_36 : f32 to vector<3x20x20xf32>
    %40 = arith.mulf %39, %38 : vector<3x20x20xf32>
    %41 = arith.addf %37, %40 : vector<3x20x20xf32>
    %42 = vector.extract_strided_slice %26 {offsets = [0, 4, 0], sizes = [3, 20, 20], strides = [1, 1, 1]} : vector<3x24x20xf32> to vector<3x20x20xf32>
    %cst_37 = arith.constant 0.0269131567 : f32
    %43 = vector.broadcast %cst_37 : f32 to vector<3x20x20xf32>
    %44 = arith.mulf %43, %42 : vector<3x20x20xf32>
    %45 = arith.addf %41, %44 : vector<3x20x20xf32>
    %c0_38 = arith.constant 0 : index
    %c0_39 = arith.constant 0 : index
    %c0_40 = arith.constant 0 : index
    %46 = vector.load %arg2[%c0_38, %c0_39, %c0_40] : memref<3x20x20xf32, #tpu.memory_space<vmem>>, vector<3x20x20xf32>
    tpu.vector_store %arg2[%c0_38, %c0_39, %c0_40], %45 {strides = array<i32>} : memref<3x20x20xf32, #tpu.memory_space<vmem>>, vector<3x20x20xf32>,
    return
  }
  func.func @transform_0(%arg0: i32) -> (i32, i32, i32) {
    %c0_i32 = arith.constant 0 : i32
    %c0_i32_0 = arith.constant 0 : i32
    %c0_i32_1 = arith.constant 0 : i32
    return %arg0, %c0_i32, %c0_i32_0 : i32, i32, i32
  }
  func.func @transform_1(%arg0: i32) -> (i32, i32, i32) {
    %c0_i32 = arith.constant 0 : i32
    %c0_i32_0 = arith.constant 0 : i32
    %c0_i32_1 = arith.constant 0 : i32
    return %arg0, %c0_i32, %c0_i32_0 : i32, i32, i32
  }
}

</mosaic_0001>

<llo_original>
// kernel: tpu_custom_call.1
$region0: #{tpu_custom_call.1}
  #allocation0 [shape = 'u32[]', space=smem, size = 0x4, offset = 0x4, fixed_abs, tag = 'smem constant byte address 0x4 - core index']
  #allocation1 [shape = 'u32[144,128]{1,0:T(1,128)}', space=vmem, size = 0x12000, scoped, tag = 'internal scratch']
  #allocation2 [shape = 'f32[3,24,24]{2,1,0:T(8,128)}', space=vmem, size = 0x9000, scoped, tag = 'scratch operand']
  %s0 = inlined_call_operand.hbm [shape: f32[6,16,16], index: 0, kind: input, shape index: {}]
  %s1 = inlined_call_operand.hbm [shape: f32[6,20,20], index: 1, kind: output, shape index: {}]
  %s2 = sld [smem:[#allocation0]]
  $region41: #{tpu_custom_call.1} parent=0
    _
  %s4 = ssub.s32 1, %s2
  %s5 = scalar_select 0, %s4, %s2
  $region1: #{tpu_custom_call.1} parent=0
    #allocation3 [shape = 'u8[49152]{0}', space=vmem, size = 0xc000, scoped, tag = 'input window, operand 0']
    #allocation4 [shape = 's32[2]{0}', space=sflag, size = 0x8, scoped, tag = 'scoped memory for tpu_custom_call.1']
    #allocation5 [shape = 's32[2]{0}', space=sflag, size = 0x8, scoped, tag = 'scoped memory for tpu_custom_call.1']
    #allocation6 [shape = 'u8[73728]{0}', space=vmem, size = 0x12000, scoped, tag = 'output window, operand 0']
    %6 = vsyncpa [#allocation4], 0
    %s7 = scalar_lea.sflag [#allocation4], 1
    %8 = vsyncpa %s7, 0
    %9 = vsyncpa [#allocation5], 0
    %s10 = scalar_lea.sflag [#allocation5], 1
    %11 = vsyncpa %s10, 0
    loop: start=0, step=1, limit=4
    $region2: #{tpu_custom_call.1} parent=1 // loop_pre_header
      _
    $region3: #{tpu_custom_call.1} parent=1 // loop_header
      %s13 = sphi 0, %s17
      %p14 = scmp.ge.s32.totalorder %s13, 4
      %s23 = sphi 0, %s25
      %s26 = sphi 0, %s23
      %s27 = sphi 0, %s26
      %s43 = sphi 0, %s27
      %s49 = sphi 0, %s51
      %s52 = sphi 0, %s49
      %s53 = sphi 0, %s52
      %s69 = sphi 0, %s53
    $region4: #{tpu_custom_call.1} parent=1 // loop_header_branch
      %16 = sbr.rel (%p14) target = $region8
    $region5: #{tpu_custom_call.1} parent=1 // loop_body
      %s18 = ssub.s32 %s13, 1
      %s19 = ssub.s32 %s13, 2
      %s20 = sadd.s32 %s13, 1
      %s21 = ssub.s32 %s13, %s20
      %p22 = scmp.eq.s32.totalorder %s21, 0
      %s24 = sadd.s32 %s23, 1
      %s25 = scalar_select %p22, %s23, %s24
      %p28 = pneg %p22
      %p29 = scmp.eq.s32.totalorder %s13, 1
      %p30 = por %p28, %p29
      %p31 = scmp.ne.s32.totalorder %s23, %s26
      %p32 = scmp.eq.s32.totalorder %s13, 0
      %p33 = por %p31, %p32
      %p34 = scmp.ne.s32.totalorder %s23, %s26
      %p35 = scmp.eq.s32.totalorder %s18, 1
      %p36 = por %p34, %p35
      %p37 = scmp.ne.s32.totalorder %s26, %s27
      %p38 = scmp.eq.s32.totalorder %s18, 0
      %p39 = por %p37, %p38
      %p40 = scmp.ne.s32.totalorder %s26, %s27
      %p41 = scmp.eq.s32.totalorder %s19, 1
      %p42 = por %p40, %p41
      %p44 = scmp.ne.s32.totalorder %s27, %s43
      %p45 = scmp.eq.s32.totalorder %s19, 0
      %p46 = por %p44, %p45
      %s47 = ssub.s32 %s13, %s20
      %p48 = scmp.eq.s32.totalorder %s47, 0
      %s50 = sadd.s32 %s49, 1
      %s51 = scalar_select %p48, %s49, %s50
      %p54 = pneg %p48
      %p55 = scmp.eq.s32.totalorder %s13, 1
      %p56 = por %p54, %p55
      %p57 = scmp.ne.s32.totalorder %s49, %s52
      %p58 = scmp.eq.s32.totalorder %s13, 0
      %p59 = por %p57, %p58
      %p60 = scmp.ne.s32.totalorder %s49, %s52
      %p61 = scmp.eq.s32.totalorder %s18, 1
      %p62 = por %p60, %p61
      %p63 = scmp.ne.s32.totalorder %s52, %s53
      %p64 = scmp.eq.s32.totalorder %s18, 0
      %p65 = por %p63, %p64
      %p66 = scmp.ne.s32.totalorder %s52, %s53
      %p67 = scmp.eq.s32.totalorder %s19, 1
      %p68 = por %p66, %p67
      %p70 = scmp.ne.s32.totalorder %s53, %s69
      %p71 = scmp.eq.s32.totalorder %s19, 0
      %p72 = por %p70, %p71
      %p73 = scmp.le.s32.totalorder 1, %s13
      %p74 = scmp.lt.s32.totalorder %s13, 3
      %p75 = pnand %p73, %p74
      %p76 = pneg %p75
      // Predicated region
      $region9: #{tpu_custom_call.1} parent=5 // pred_check
        _
      $region10: #{tpu_custom_call.1} parent=5 // pred_check_branch
        %78 = sbr.rel (%p75) target = $region12
      $region11: #{tpu_custom_call.1} parent=5 // pred_region
        %s79 = ssub.s32 %s13, 1
      $region12: #{tpu_custom_call.1} parent=5 // pred_fallthru
        _
      %p80 = scmp.lt.s32.totalorder %s13, 2
      // Predicated region
      $region13: #{tpu_custom_call.1} parent=5 // pred_check
        %p81 = pneg %p80
      $region14: #{tpu_custom_call.1} parent=5 // pred_check_branch
        %83 = sbr.rel (%p81) target = $region16
      $region15: #{tpu_custom_call.1} parent=5 // pred_region
        // Predicated region
        $region17: #{tpu_custom_call.1} parent=15 // pred_check
          %p84 = pneg %p33
        $region18: #{tpu_custom_call.1} parent=15 // pred_check_branch
          %86 = sbr.rel (%p84) target = $region20
        $region19: #{tpu_custom_call.1} parent=15 // pred_region
          %s87 = sand.u32 %s23, 1
          %s88 = scalar_lea.sflag [#allocation4], %s87
          %s89 = sand.u32 %s23, 1
          %s90 = smul.addr %s89, 48
          %s91 = scalar_lea.vmem [#allocation3], %s90
          %s92 = smul.u32 3, %s13
          %s94 = ssub.s32 768, 768
          %95 = vsyncadd %s88, %s94
          %s96 = smul.addr %s92, 2
          %s97 = smul.addr %s96, 128
          %s98 = scalar_lea.hbm %s0, %s97
          %s99 = sshll.u32 %s91, 4
          %s100 = int_to_ptr.vmem [resolvable:$true] %s99
          %105 = dma.hbm_to_vmem [thread:$0]  %s98, 768, %s100, %s88, 128, 128, 8
        $region20: #{tpu_custom_call.1} parent=15 // pred_fallthru
          _
      $region16: #{tpu_custom_call.1} parent=5 // pred_fallthru
        _
      %p106 = scmp.le.s32.totalorder 1, %s13
      %p107 = scmp.lt.s32.totalorder %s13, 3
      %p108 = pnand %p106, %p107
      %p109 = pneg %p108
      // Predicated region
      $region21: #{tpu_custom_call.1} parent=5 // pred_check
        _
      $region22: #{tpu_custom_call.1} parent=5 // pred_check_branch
        %111 = sbr.rel (%p108) target = $region24
      $region23: #{tpu_custom_call.1} parent=5 // pred_region
        %s112 = ssub.s32 %s13, 1
        %s113 = sand.u32 %s26, 1
        %s114 = scalar_lea.sflag [#allocation4], %s113
        %s115 = sand.u32 %s26, 1
        %s116 = smul.addr %s115, 48
        %s117 = scalar_lea.vmem [#allocation3], %s116
        // Predicated region
        $region25: #{tpu_custom_call.1} parent=23 // pred_check
          %p118 = pneg %p39
        $region26: #{tpu_custom_call.1} parent=23 // pred_check_branch
          %120 = sbr.rel (%p118) target = $region28
        $region27: #{tpu_custom_call.1} parent=23 // pred_region
          %121 = dma.done %s114, 768
        $region28: #{tpu_custom_call.1} parent=23 // pred_fallthru
          _
        %s122 = sand.u32 %s26, 1
        %s123 = scalar_lea.sflag [#allocation4], %s122
        %s124 = sand.u32 %s26, 1
        %s125 = smul.addr %s124, 48
        %s126 = scalar_lea.vmem [#allocation3], %s125
        %p127 = pneg %p39
        %p128 = pneg %p36
        %p129 = pneg %p65
        %p130 = pneg %p62
        %s131 = sand.u32 %s52, 1
        %s132 = scalar_lea.sflag [#allocation5], %s131
        %s133 = sand.u32 %s52, 1
        %s134 = smul.addr %s133, 72
        %s135 = scalar_lea.vmem [#allocation6], %s134
        %s136 = smul.u32 3, %s18
        %s137 = smul.u32 3, %s18
        %vm138 = vcmask 191488
        %139 = vst.msk [vmem:[#allocation2] sm:$0xf] %vm138, 0.0
        %140 = vst.msk [vmem:[#allocation2 + $0x18] sm:$0xf] %vm138, 0.0
        %141 = vst.msk [vmem:[#allocation2 + $0x30] sm:$0xf] %vm138, 0.0
        %142 = vst.msk [vmem:[#allocation2 + $0x14] sm:$0xf] %vm138, 0.0
        %143 = vst.msk [vmem:[#allocation2 + $0x2c] sm:$0xf] %vm138, 0.0
        %144 = vst.msk [vmem:[#allocation2 + $0x44] sm:$0xf] %vm138, 0.0
        %vm145 = vcmask 31744
        %146 = vst.msk [vmem:[#allocation2 + $0x4] sm:$0xff] %vm145, 0.0
        %147 = vst.msk [vmem:[#allocation2 + $0xc] sm:$0xff] %vm145, 0.0
        %148 = vst.msk [vmem:[#allocation2 + $0x1c] sm:$0xff] %vm145, 0.0
        %149 = vst.msk [vmem:[#allocation2 + $0x24] sm:$0xff] %vm145, 0.0
        %150 = vst.msk [vmem:[#allocation2 + $0x34] sm:$0xff] %vm145, 0.0
        %151 = vst.msk [vmem:[#allocation2 + $0x3c] sm:$0xff] %vm145, 0.0
        %vm152 = vcmask 195744
        %153 = vst.msk [vmem:[#allocation2 + $0x4] sm:$0xff] %vm152, 0.0
        %154 = vst.msk [vmem:[#allocation2 + $0xc] sm:$0xff] %vm152, 0.0
        %155 = vst.msk [vmem:[#allocation2 + $0x1c] sm:$0xff] %vm152, 0.0
        %156 = vst.msk [vmem:[#allocation2 + $0x24] sm:$0xff] %vm152, 0.0
        %157 = vst.msk [vmem:[#allocation2 + $0x34] sm:$0xff] %vm152, 0.0
        %158 = vst.msk [vmem:[#allocation2 + $0x3c] sm:$0xff] %vm152, 0.0
        %v159 = vld [vmem:[%s117] sm:$0xff]
        %v160 = vld [vmem:[%s117 + $0x8] sm:$0xff]
        %v161 = vld [vmem:[%s117 + $0x10] sm:$0xff]
        %v162 = vld [vmem:[%s117 + $0x18] sm:$0xff]
        %v163 = vld [vmem:[%s117 + $0x20] sm:$0xff]
        %v164 = vld [vmem:[%s117 + $0x28] sm:$0xff]
        %171 = vrot.lane.b32.xlu0 %v159, 4
        %v172 = vpop.permute.xlu0 %171
        %173 = vrot.lane.b32.xlu0 %v160, 4
        %v174 = vpop.permute.xlu0 %173
        %175 = vrot.lane.b32.xlu0 %v161, 4
        %v176 = vpop.permute.xlu0 %175
        %177 = vrot.lane.b32.xlu0 %v162, 4
        %v178 = vpop.permute.xlu0 %177
        %179 = vrot.lane.b32.xlu0 %v163, 4
        %v180 = vpop.permute.xlu0 %179
        %181 = vrot.lane.b32.xlu0 %v164, 4
        %v182 = vpop.permute.xlu0 %181
        %vm189 = vcmask 162848
        %190 = vst.msk [vmem:[#allocation2 + $0x4] sm:$0xff] %vm189, %v172
        %191 = vst.msk [vmem:[#allocation2 + $0xc] sm:$0xff] %vm189, %v174
        %192 = vst.msk [vmem:[#allocation2 + $0x1c] sm:$0xff] %vm189, %v176
        %193 = vst.msk [vmem:[#allocation2 + $0x24] sm:$0xff] %vm189, %v178
        %194 = vst.msk [vmem:[#allocation2 + $0x34] sm:$0xff] %vm189, %v180
        %195 = vst.msk [vmem:[#allocation2 + $0x3c] sm:$0xff] %vm189, %v182
        %v196 = vld [vmem:[#allocation2] sm:$0xff]
        %v197 = vld [vmem:[#allocation2 + $0x8] sm:$0xff]
        %v198 = vld [vmem:[#allocation2 + $0x10] sm:$0xff]
        %v199 = vld [vmem:[#allocation2 + $0x18] sm:$0xff]
        %v200 = vld [vmem:[#allocation2 + $0x20] sm:$0xff]
        %v201 = vld [vmem:[#allocation2 + $0x28] sm:$0xff]
        %v202 = vld [vmem:[#allocation2 + $0x30] sm:$0xff]
        %v203 = vld [vmem:[#allocation2 + $0x38] sm:$0xff]
        %v204 = vld [vmem:[#allocation2 + $0x40] sm:$0xff]
        %v205 = vmul.f32 %v196, 0.026913157
        %v206 = vmul.f32 %v197, 0.026913157
        %v207 = vmul.f32 %v198, 0.026913157
        %v208 = vmul.f32 %v199, 0.026913157
        %v209 = vmul.f32 %v200, 0.026913157
        %v210 = vmul.f32 %v201, 0.026913157
        %v211 = vmul.f32 %v202, 0.026913157
        %v212 = vmul.f32 %v203, 0.026913157
        %v213 = vmul.f32 %v204, 0.026913157
        %v214 = vmul.f32 %v196, 0.23336768
        %v215 = vmul.f32 %v197, 0.23336768
        %v216 = vmul.f32 %v198, 0.23336768
        %v217 = vmul.f32 %v199, 0.23336768
        %v218 = vmul.f32 %v200, 0.23336768
        %v219 = vmul.f32 %v201, 0.23336768
        %v220 = vmul.f32 %v202, 0.23336768
        %v221 = vmul.f32 %v203, 0.23336768
        %v222 = vmul.f32 %v204, 0.23336768
        %232 = vrot.lane.b32.xlu0 %v214, 127
        %v233 = vpop.permute.xlu0 %232
        %234 = vrot.lane.b32.xlu0 %v215, 127
        %v235 = vpop.permute.xlu0 %234
        %236 = vrot.lane.b32.xlu0 %v216, 127
        %v237 = vpop.permute.xlu0 %236
        %238 = vrot.lane.b32.xlu0 %v217, 127
        %v239 = vpop.permute.xlu0 %238
        %240 = vrot.lane.b32.xlu0 %v218, 127
        %v241 = vpop.permute.xlu0 %240
        %242 = vrot.lane.b32.xlu0 %v219, 127
        %v243 = vpop.permute.xlu0 %242
        %244 = vrot.lane.b32.xlu0 %v220, 127
        %v245 = vpop.permute.xlu0 %244
        %246 = vrot.lane.b32.xlu0 %v221, 127
        %v247 = vpop.permute.xlu0 %246
        %248 = vrot.lane.b32.xlu0 %v222, 127
        %v249 = vpop.permute.xlu0 %248
        %v259 = vadd.f32 %v205, %v233
        %v260 = vadd.f32 %v206, %v235
        %v261 = vadd.f32 %v207, %v237
        %v262 = vadd.f32 %v208, %v239
        %v263 = vadd.f32 %v209, %v241
        %v264 = vadd.f32 %v210, %v243
        %v265 = vadd.f32 %v211, %v245
        %v266 = vadd.f32 %v212, %v247
        %v267 = vadd.f32 %v213, %v249
        %v268 = vmul.f32 %v196, 0.4794383
        %v269 = vmul.f32 %v197, 0.4794383
        %v270 = vmul.f32 %v198, 0.4794383
        %v271 = vmul.f32 %v199, 0.4794383
        %v272 = vmul.f32 %v200, 0.4794383
        %v273 = vmul.f32 %v201, 0.4794383
        %v274 = vmul.f32 %v202, 0.4794383
        %v275 = vmul.f32 %v203, 0.4794383
        %v276 = vmul.f32 %v204, 0.4794383
        %286 = vrot.lane.b32.xlu0 %v268, 126
        %v287 = vpop.permute.xlu0 %286
        %288 = vrot.lane.b32.xlu0 %v269, 126
        %v289 = vpop.permute.xlu0 %288
        %290 = vrot.lane.b32.xlu0 %v270, 126
        %v291 = vpop.permute.xlu0 %290
        %292 = vrot.lane.b32.xlu0 %v271, 126
        %v293 = vpop.permute.xlu0 %292
        %294 = vrot.lane.b32.xlu0 %v272, 126
        %v295 = vpop.permute.xlu0 %294
        %296 = vrot.lane.b32.xlu0 %v273, 126
        %v297 = vpop.permute.xlu0 %296
        %298 = vrot.lane.b32.xlu0 %v274, 126
        %v299 = vpop.permute.xlu0 %298
        %300 = vrot.lane.b32.xlu0 %v275, 126
        %v301 = vpop.permute.xlu0 %300
        %302 = vrot.lane.b32.xlu0 %v276, 126
        %v303 = vpop.permute.xlu0 %302
        %v313 = vadd.f32 %v259, %v287
        %v314 = vadd.f32 %v260, %v289
        %v315 = vadd.f32 %v261, %v291
        %v316 = vadd.f32 %v262, %v293
        %v317 = vadd.f32 %v263, %v295
        %v318 = vadd.f32 %v264, %v297
        %v319 = vadd.f32 %v265, %v299
        %v320 = vadd.f32 %v266, %v301
        %v321 = vadd.f32 %v267, %v303
        %322 = vrot.lane.b32.xlu0 %v214, 125
        %v323 = vpop.permute.xlu0 %322
        %324 = vrot.lane.b32.xlu0 %v215, 125
        %v325 = vpop.permute.xlu0 %324
        %326 = vrot.lane.b32.xlu0 %v216, 125
        %v327 = vpop.permute.xlu0 %326
        %328 = vrot.lane.b32.xlu0 %v217, 125
        %v329 = vpop.permute.xlu0 %328
        %330 = vrot.lane.b32.xlu0 %v218, 125
        %v331 = vpop.permute.xlu0 %330
        %332 = vrot.lane.b32.xlu0 %v219, 125
        %v333 = vpop.permute.xlu0 %332
        %334 = vrot.lane.b32.xlu0 %v220, 125
        %v335 = vpop.permute.xlu0 %334
        %336 = vrot.lane.b32.xlu0 %v221, 125
        %v337 = vpop.permute.xlu0 %336
        %338 = vrot.lane.b32.xlu0 %v222, 125
        %v339 = vpop.permute.xlu0 %338
        %v349 = vadd.f32 %v313, %v323
        %v350 = vadd.f32 %v314, %v325
        %v351 = vadd.f32 %v315, %v327
        %v352 = vadd.f32 %v316, %v329
        %v353 = vadd.f32 %v317, %v331
        %v354 = vadd.f32 %v318, %v333
        %v355 = vadd.f32 %v319, %v335
        %v356 = vadd.f32 %v320, %v337
        %v357 = vadd.f32 %v321, %v339
        %367 = vrot.lane.b32.xlu0 %v205, 124
        %v368 = vpop.permute.xlu0 %367
        %369 = vrot.lane.b32.xlu0 %v206, 124
        %v370 = vpop.permute.xlu0 %369
        %371 = vrot.lane.b32.xlu0 %v207, 124
        %v372 = vpop.permute.xlu0 %371
        %373 = vrot.lane.b32.xlu0 %v208, 124
        %v374 = vpop.permute.xlu0 %373
        %375 = vrot.lane.b32.xlu0 %v209, 124
        %v376 = vpop.permute.xlu0 %375
        %377 = vrot.lane.b32.xlu0 %v210, 124
        %v378 = vpop.permute.xlu0 %377
        %379 = vrot.lane.b32.xlu0 %v211, 124
        %v380 = vpop.permute.xlu0 %379
        %381 = vrot.lane.b32.xlu0 %v212, 124
        %v382 = vpop.permute.xlu0 %381
        %383 = vrot.lane.b32.xlu0 %v213, 124
        %v384 = vpop.permute.xlu0 %383
        %v394 = vadd.f32 %v349, %v368
        %v395 = vadd.f32 %v350, %v370
        %v396 = vadd.f32 %v351, %v372
        %v397 = vadd.f32 %v352, %v374
        %v398 = vadd.f32 %v353, %v376
        %v399 = vadd.f32 %v354, %v378
        %v400 = vadd.f32 %v355, %v380
        %v401 = vadd.f32 %v356, %v382
        %v402 = vadd.f32 %v357, %v384
        %v403 = vmul.f32 %v394, 0.026913157
        %v404 = vmul.f32 %v395, 0.026913157
        %v405 = vmul.f32 %v396, 0.026913157
        %v406 = vmul.f32 %v397, 0.026913157
        %v407 = vmul.f32 %v398, 0.026913157
        %v408 = vmul.f32 %v399, 0.026913157
        %v409 = vmul.f32 %v400, 0.026913157
        %v410 = vmul.f32 %v401, 0.026913157
        %v411 = vmul.f32 %v402, 0.026913157
        %v412 = vmul.f32 %v394, 0.23336768
        %v413 = vmul.f32 %v395, 0.23336768
        %v414 = vmul.f32 %v396, 0.23336768
        %v415 = vmul.f32 %v397, 0.23336768
        %v416 = vmul.f32 %v398, 0.23336768
        %v417 = vmul.f32 %v399, 0.23336768
        %v418 = vmul.f32 %v400, 0.23336768
        %v419 = vmul.f32 %v401, 0.23336768
        %v420 = vmul.f32 %v402, 0.23336768
        %vm430 = vcmask 1046528
        %v431 = vrot.slane %v412, 1
        %v432 = vrot.slane %v413, 1
        %v433 = vsel %vm430, %v431, %v432
        %v434 = vrot.slane %v414, 1
        %v435 = vsel %vm430, %v432, %v434
        %v436 = vrot.slane %v415, 1
        %v437 = vrot.slane %v416, 1
        %v438 = vsel %vm430, %v436, %v437
        %v439 = vrot.slane %v417, 1
        %v440 = vsel %vm430, %v437, %v439
        %v441 = vrot.slane %v418, 1
        %v442 = vrot.slane %v419, 1
        %v443 = vsel %vm430, %v441, %v442
        %v444 = vrot.slane %v420, 1
        %v445 = vsel %vm430, %v442, %v444
        %v455 = vadd.f32 %v403, %v433
        %v456 = vadd.f32 %v404, %v435
        %v457 = vadd.f32 %v405, %v434
        %v458 = vadd.f32 %v406, %v438
        %v459 = vadd.f32 %v407, %v440
        %v460 = vadd.f32 %v408, %v439
        %v461 = vadd.f32 %v409, %v443
        %v462 = vadd.f32 %v410, %v445
        %v463 = vadd.f32 %v411, %v444
        %v464 = vmul.f32 %v394, 0.4794383
        %v465 = vmul.f32 %v395, 0.4794383
        %v466 = vmul.f32 %v396, 0.4794383
        %v467 = vmul.f32 %v397, 0.4794383
        %v468 = vmul.f32 %v398, 0.4794383
        %v469 = vmul.f32 %v399, 0.4794383
        %v470 = vmul.f32 %v400, 0.4794383
        %v471 = vmul.f32 %v401, 0.4794383
        %v472 = vmul.f32 %v402, 0.4794383
        %vm482 = vcmask 1045504
        %v483 = vrot.slane %v464, 2
        %v484 = vrot.slane %v465, 2
        %v485 = vsel %vm482, %v483, %v484
        %v486 = vrot.slane %v466, 2
        %v487 = vsel %vm482, %v484, %v486
        %v488 = vrot.slane %v467, 2
        %v489 = vrot.slane %v468, 2
        %v490 = vsel %vm482, %v488, %v489
        %v491 = vrot.slane %v469, 2
        %v492 = vsel %vm482, %v489, %v491
        %v493 = vrot.slane %v470, 2
        %v494 = vrot.slane %v471, 2
        %v495 = vsel %vm482, %v493, %v494
        %v496 = vrot.slane %v472, 2
        %v497 = vsel %vm482, %v494, %v496
        %v507 = vadd.f32 %v455, %v485
        %v508 = vadd.f32 %v456, %v487
        %v509 = vadd.f32 %v457, %v486
        %v510 = vadd.f32 %v458, %v490
        %v511 = vadd.f32 %v459, %v492
        %v512 = vadd.f32 %v460, %v491
        %v513 = vadd.f32 %v461, %v495
        %v514 = vadd.f32 %v462, %v497
        %v515 = vadd.f32 %v463, %v496
        %vm516 = vcmask 1044480
        %v517 = vrot.slane %v412, 3
        %v518 = vrot.slane %v413, 3
        %v519 = vsel %vm516, %v517, %v518
        %v520 = vrot.slane %v414, 3
        %v521 = vsel %vm516, %v518, %v520
        %v522 = vrot.slane %v415, 3
        %v523 = vrot.slane %v416, 3
        %v524 = vsel %vm516, %v522, %v523
        %v525 = vrot.slane %v417, 3
        %v526 = vsel %vm516, %v523, %v525
        %v527 = vrot.slane %v418, 3
        %v528 = vrot.slane %v419, 3
        %v529 = vsel %vm516, %v527, %v528
        %v530 = vrot.slane %v420, 3
        %v531 = vsel %vm516, %v528, %v530
        %v541 = vadd.f32 %v507, %v519
        %v542 = vadd.f32 %v508, %v521
        %v543 = vadd.f32 %v509, %v520
        %v544 = vadd.f32 %v510, %v524
        %v545 = vadd.f32 %v511, %v526
        %v546 = vadd.f32 %v512, %v525
        %v547 = vadd.f32 %v513, %v529
        %v548 = vadd.f32 %v514, %v531
        %v549 = vadd.f32 %v515, %v530
        %vm559 = vcmask 1043456
        %v560 = vrot.slane %v403, 4
        %v561 = vrot.slane %v404, 4
        %v562 = vsel %vm559, %v560, %v561
        %v563 = vrot.slane %v405, 4
        %v564 = vsel %vm559, %v561, %v563
        %v565 = vrot.slane %v406, 4
        %v566 = vrot.slane %v407, 4
        %v567 = vsel %vm559, %v565, %v566
        %v568 = vrot.slane %v408, 4
        %v569 = vsel %vm559, %v566, %v568
        %v570 = vrot.slane %v409, 4
        %v571 = vrot.slane %v410, 4
        %v572 = vsel %vm559, %v570, %v571
        %v573 = vrot.slane %v411, 4
        %v574 = vsel %vm559, %v571, %v573
        %v584 = vadd.f32 %v541, %v562
        %v585 = vadd.f32 %v542, %v564
        %v586 = vadd.f32 %v543, %v563
        %v587 = vadd.f32 %v544, %v567
        %v588 = vadd.f32 %v545, %v569
        %v589 = vadd.f32 %v546, %v568
        %v590 = vadd.f32 %v547, %v572
        %v591 = vadd.f32 %v548, %v574
        %v592 = vadd.f32 %v549, %v573
        %vm593 = vcmask 162816
        %594 = vst.msk [vmem:[%s135] sm:$0xff] %vm593, %v584
        %595 = vst.msk [vmem:[%s135 + $0x8] sm:$0xff] %vm593, %v585
        %vm596 = vcmask 158720
        %597 = vst.msk [vmem:[%s135 + $0x10] sm:$0xf] %vm596, %v586
        %598 = vst.msk [vmem:[%s135 + $0x18] sm:$0xff] %vm593, %v587
        %599 = vst.msk [vmem:[%s135 + $0x20] sm:$0xff] %vm593, %v588
        %600 = vst.msk [vmem:[%s135 + $0x28] sm:$0xf] %vm596, %v589
        %601 = vst.msk [vmem:[%s135 + $0x30] sm:$0xff] %vm593, %v590
        %602 = vst.msk [vmem:[%s135 + $0x38] sm:$0xff] %vm593, %v591
        %603 = vst.msk [vmem:[%s135 + $0x40] sm:$0xf] %vm596, %v592
        %s604 = sand.u32 %s52, 1
        %s605 = scalar_lea.sflag [#allocation5], %s604
        %s606 = sand.u32 %s52, 1
        %s607 = smul.addr %s606, 72
        %s608 = scalar_lea.vmem [#allocation6], %s607
        // Predicated region
        $region29: #{tpu_custom_call.1} parent=23 // pred_check
          %p609 = pneg %p62
        $region30: #{tpu_custom_call.1} parent=23 // pred_check_branch
          %611 = sbr.rel (%p609) target = $region32
        $region31: #{tpu_custom_call.1} parent=23 // pred_region
          %s612 = smul.u32 3, %s18
          %s614 = ssub.s32 1152, 1152
          %615 = vsyncadd %s605, %s614
          %s616 = smul.addr %s612, 3
          %s617 = smul.addr %s616, 128
          %s618 = scalar_lea.hbm %s1, %s617
          %s619 = sshll.u32 %s608, 4
          %s620 = int_to_ptr.vmem [resolvable:$true] %s619
          %625 = dma.vmem_to_hbm [thread:$0]  %s620, 1152, %s618, %s605, 128, 128, 8
        $region32: #{tpu_custom_call.1} parent=23 // pred_fallthru
          _
      $region24: #{tpu_custom_call.1} parent=5 // pred_fallthru
        _
      %p626 = scmp.le.s32.totalorder 2, %s13
      // Predicated region
      $region33: #{tpu_custom_call.1} parent=5 // pred_check
        %p627 = pneg %p626
      $region34: #{tpu_custom_call.1} parent=5 // pred_check_branch
        %629 = sbr.rel (%p627) target = $region36
      $region35: #{tpu_custom_call.1} parent=5 // pred_region
        %s630 = ssub.s32 %s13, 2
        // Predicated region
        $region37: #{tpu_custom_call.1} parent=35 // pred_check
          %p631 = pneg %p68
        $region38: #{tpu_custom_call.1} parent=35 // pred_check_branch
          %633 = sbr.rel (%p631) target = $region40
        $region39: #{tpu_custom_call.1} parent=35 // pred_region
          %s634 = sand.u32 %s53, 1
          %s635 = scalar_lea.sflag [#allocation5], %s634
          %s636 = sand.u32 %s53, 1
          %s637 = smul.addr %s636, 72
          %s638 = scalar_lea.vmem [#allocation6], %s637
          %639 = dma.done %s635, 1152
        $region40: #{tpu_custom_call.1} parent=35 // pred_fallthru
          _
      $region36: #{tpu_custom_call.1} parent=5 // pred_fallthru
        _
    $region6: #{tpu_custom_call.1} parent=1 // loop_footer
      %s17 = sadd.s32 1, %s13
    $region7: #{tpu_custom_call.1} parent=1 // loop_footer_branch
      %12 = sbr.rel target = $region3
    $region8: #{tpu_custom_call.1} parent=1 // loop_exit
      _
    %640 = vsyncpa [#allocation4], 1
    %s641 = scalar_lea.sflag [#allocation4], 1
    %642 = vsyncpa %s641, 1
    %643 = vsyncpa [#allocation5], 1
    %s644 = scalar_lea.sflag [#allocation5], 1
    %645 = vsyncpa %s644, 1

</llo_original>
